<compile_context>
chip_gen: v6e
topology: v6e:2x2x1
jax: 0.10.0
libtpu: 0.0.40
codegen_flags: <defaults>
</compile_context>

<pallas_src>
import functools

import jax
import jax.numpy as jnp
from jax.experimental import pallas as pl
from jax.experimental.pallas import tpu as pltpu

ALPHA = 1.0
GAMMA = 2.0

LANE = 128
SUBLANE = 8

TILE_ROWS = 2048            # (2048, 128) f32 = 1 MiB of logits per grid step
NUM_PARTIALS = 2            # leading "parallel" axis -> two partial sums
VMEM_LIMIT_BYTES = 32 * 1024 * 1024

# Value-neutral padding: logit=+100, target=1  ==>  bce = log1p(exp(-100)) ~ 0
# and (1 - pt) == 0 exactly in f32, so padded elements contribute 0 to the sum
# for any gamma and no in-kernel mask is needed.
PAD_LOGIT = 100
PAD_TARGET = 1


def _round_up(a, b):
    return -(-a // b) * b


def _focal_elementwise(x, t, gamma, binary_targets):
    """Elementwise (1 - pt)^gamma * bce  (alpha is hoisted to the wrapper)."""
    x = x.astype(jnp.float32)
    t = t.astype(jnp.float32)
    ax = jnp.abs(x)
    e = jnp.exp(-ax)                    # EUP
    log1pe = jnp.log1p(e)               # EUP

    if binary_targets:
        # Hard 0/1 targets: form pt from sigmoid pieces with one divide
        # instead of a second exp (EUP is the tight slot on v7x).
        agree = (x * (2.0 * t - 1.0)) >= 0.0
        bce = jnp.where(agree, 0.0, ax) + log1pe
        inv = 1.0 / (1.0 + e)           # accurate divide (keeps ~1e-7 rtol)
        one_m_pt = jnp.where(agree, e, 1.0) * inv
    else:
        # General / soft-label path: exactly the torch formulation.
        bce = jnp.maximum(x, 0.0) - x * t + log1pe
        one_m_pt = 1.0 - jnp.exp(-bce)

    g = float(gamma)
    if g == int(g) and int(g) >= 0:
        gi = int(g)
        if gi == 0:
            w = jnp.ones_like(one_m_pt)
        else:
            # Unrolled product: pure VPU muls, no exp/log pow lowering and no
            # log(0) hazard when pt == 1.
            w = one_m_pt
            for _ in range(gi - 1):
                w = w * one_m_pt
    else:
        w = one_m_pt ** gamma
    return w * bce


def _focal_sum_kernel(x_ref, t_ref, o_ref, acc_ref, *, gamma, binary_targets,
                      tile_rows):
    """Grid (P, steps): running per-partial sum -> one scalar per partial.

    x_ref, t_ref : (tile_rows, LANE) blocks (native dtype, cast in-kernel)
    o_ref        : (1, 1, 1) f32 partial sum for this partial index
    acc_ref      : (SUBLANE, LANE) f32 VMEM running accumulator
    """
    step = pl.program_id(1)
    nsteps = pl.num_programs(1)

    @pl.when(step == 0)
    def _():
        acc_ref[...] = jnp.zeros_like(acc_ref)

    focal = _focal_elementwise(x_ref[...], t_ref[...], gamma, binary_targets)
    # Per-(sublane, lane) accumulation: pure VPU adds every step; the costly
    # cross-lane/sublane reduce happens exactly once per partial at the end.
    acc_ref[...] += focal.reshape(tile_rows // SUBLANE, SUBLANE, LANE).sum(axis=0)

    @pl.when(step == nsteps - 1)
    def _():
        o_ref[...] = jnp.sum(acc_ref[...])[None, None, None]


def _run_reduction(x2, t2, *, tile_rows, num_partials, steps, gamma,
                   binary_targets):
    """Sum focal loss over the first num_partials*steps*tile_rows rows of x2/t2."""
    kernel = functools.partial(
        _focal_sum_kernel, gamma=gamma, binary_targets=binary_targets,
        tile_rows=tile_rows)

    partials = pl.pallas_call(
        kernel,
        out_shape=jax.ShapeDtypeStruct((num_partials, 1, 1), jnp.float32),
        grid_spec=pltpu.PrefetchScalarGridSpec(
            num_scalar_prefetch=0,
            grid=(num_partials, steps),
            in_specs=[
                pl.BlockSpec((tile_rows, LANE), lambda c, i: (c * steps + i, 0)),
                pl.BlockSpec((tile_rows, LANE), lambda c, i: (c * steps + i, 0)),
            ],
            out_specs=pl.BlockSpec((1, 1, 1), lambda c, i: (c, 0, 0)),
            scratch_shapes=[pltpu.VMEM((SUBLANE, LANE), jnp.float32)],
        ),
        # TODO(synk): on v7x, pltpu.CORE_PARALLEL on the leading axis would
        # guarantee the two partials land on the two TensorCores.
        compiler_params=pltpu.CompilerParams(
            dimension_semantics=("parallel", "arbitrary"),
            vmem_limit_bytes=VMEM_LIMIT_BYTES),
    )(x2, t2)
    return jnp.sum(partials)


def binary_focal_loss(inputs, targets, alpha=ALPHA, gamma=GAMMA,
                      size_average=True, binary_targets=True):
    """JAX/Pallas equivalent of BinaryFocalLoss.forward.

    Set binary_targets=False if targets are soft labels (keeps the exact
    pt = exp(-bce) formulation at the cost of one extra exp per element).
    """
    assert inputs.shape == targets.shape
    n_elem = int(inputs.size)
    assert n_elem > 0

    # Native dtypes all the way into the kernel; casting to f32 is free VPU
    # work there, whereas a wrapper-side cast is a full extra HBM pass.
    x = inputs.reshape(-1)
    t = targets.reshape(-1)

    if n_elem % LANE:
        # TODO(synk): lane-misaligned element counts pay one full pad copy of
        # the flat arrays; a 1-D ragged boundary block would avoid it.
        pad = LANE - n_elem % LANE
        x = jnp.pad(x, (0, pad), constant_values=PAD_LOGIT)
        t = jnp.pad(t, (0, pad), constant_values=PAD_TARGET)
    rows = x.shape[0] // LANE
    x2 = x.reshape(rows, LANE)          # row-major reshape: no data movement
    t2 = t.reshape(rows, LANE)

    chunk_rows = NUM_PARTIALS * TILE_ROWS
    main_steps = rows // chunk_rows     # per-partial steps of the tiled call
    main_rows = main_steps * chunk_rows
    tail_rows = rows - main_rows

    total = jnp.zeros((), jnp.float32)

    if main_steps > 0:
        # The tiled call addresses only the chunk-aligned prefix blocks of the
        # full (rows, LANE) slab via its index_map -> no pad/slice copy of the
        # big arrays, no masking.
        total = total + _run_reduction(
            x2, t2, tile_rows=TILE_ROWS, num_partials=NUM_PARTIALS,
            steps=main_steps, gamma=gamma, binary_targets=binary_targets)

    if tail_rows > 0:
        if main_rows > 0:
            x_tail = x2[main_rows:]     # small copy (< NUM_PARTIALS*TILE_ROWS rows)
            t_tail = t2[main_rows:]
        else:
            x_tail, t_tail = x2, t2
        tail_tile = min(TILE_ROWS, _round_up(tail_rows, SUBLANE))
        padded_rows = _round_up(tail_rows, tail_tile)
        if padded_rows != tail_rows:
            x_tail = jnp.pad(x_tail, ((0, padded_rows - tail_rows), (0, 0)),
                             constant_values=PAD_LOGIT)
            t_tail = jnp.pad(t_tail, ((0, padded_rows - tail_rows), (0, 0)),
                             constant_values=PAD_TARGET)
        total = total + _run_reduction(
            x_tail, t_tail, tile_rows=tail_tile, num_partials=1,
            steps=padded_rows // tail_tile, gamma=gamma,
            binary_targets=binary_targets)

    if float(alpha) != 1.0:             # alpha hoisted out of the per-element path
        total = total * jnp.float32(alpha)

    if size_average:
        return total / jnp.float32(n_elem)
    return total


def _reference(inputs, targets, alpha=ALPHA, gamma=GAMMA, size_average=True):
    x = inputs.astype(jnp.float32)
    t = targets.astype(jnp.float32)
    bce = jnp.maximum(x, 0.0) - x * t + jnp.log1p(jnp.exp(-jnp.abs(x)))
    pt = jnp.exp(-bce)
    focal = alpha * (1.0 - pt) ** gamma * bce
    return jnp.mean(focal) if size_average else jnp.sum(focal)


if __name__ == "__main__":
    key = jax.random.PRNGKey(0)
    k1, k2, k3, k4, k5, k6 = jax.random.split(key, 6)

    # 1) Small NCHW case (single small block, no padding).
    x_s = jax.random.normal(k1, (2, 4, 16, 16), dtype=jnp.float32) * 2.0
    t_s = (jax.random.uniform(k2, (2, 4, 16, 16)) > 0.5).astype(jnp.float32)
    out_s = jax.block_until_ready(binary_focal_loss(x_s, t_s))
    ref_s = _reference(x_s, t_s)
    assert jnp.allclose(out_s, ref_s, rtol=1e-4, atol=1e-5), (out_s, ref_s)

    # 2) size_average=False (sum reduction) on the small case.
    out_sum = jax.block_until_ready(
        binary_focal_loss(x_s, t_s, size_average=False))
    ref_sum = _reference(x_s, t_s, size_average=False)
    assert jnp.allclose(out_sum, ref_sum, rtol=1e-4, atol=1e-3), (out_sum,
                                                                  ref_sum)

    # 3) Soft labels via the general (exp(-bce)) path.
    t_soft = jax.random.uniform(k5, (2, 4, 16, 16), dtype=jnp.float32)
    out_soft = jax.block_until_ready(
        binary_focal_loss(x_s, t_soft, binary_targets=False))
    ref_soft = _reference(x_s, t_soft)
    assert jnp.allclose(out_soft, ref_soft, rtol=1e-4, atol=1e-5), (out_soft,
                                                                    ref_soft)

    # 4) Larger case exercising the tiled dual-partial path plus a tail
    #    (5120 rows -> one 4096-row chunk on the tiled call + 1024-row tail).
    x_l = jax.random.normal(k3, (10, 4, 128, 128), dtype=jnp.float32) * 2.0
    t_l = (jax.random.uniform(k4, (10, 4, 128, 128)) > 0.5).astype(jnp.float32)
    out_l = jax.block_until_ready(binary_focal_loss(x_l, t_l))
    ref_l = _reference(x_l, t_l)
    assert jnp.allclose(out_l, ref_l, rtol=1e-4, atol=1e-5), (out_l, ref_l)

    # 5) Lane-misaligned element count (231 elements -> neutral padding path).
    x_m = jax.random.normal(k6, (3, 7, 11), dtype=jnp.float32) * 2.0
    t_m = (x_m > 0.3).astype(jnp.float32)
    out_m = jax.block_until_ready(binary_focal_loss(x_m, t_m))
    ref_m = _reference(x_m, t_m)
    assert jnp.allclose(out_m, ref_m, rtol=1e-4, atol=1e-5), (out_m, ref_m)

    print("KERNEL_OK")
</pallas_src>

<mosaic_0001>
module attributes {stable_mosaic.version = 11 : i64} {
  func.func @_focal_sum_kernel(%arg0: i32, %arg1: i32, %arg2: memref<16x128xf32, #tpu.memory_space<vmem>>, %arg3: memref<16x128xf32, #tpu.memory_space<vmem>>, %arg4: memref<1x1x1xf32, #tpu.memory_space<vmem>>, %arg5: memref<8x128xf32, #tpu.memory_space<vmem>>) attributes {dimension_semantics = [#tpu.dimension_semantics<parallel>, #tpu.dimension_semantics<arbitrary>], iteration_bounds = array<i64: 1, 1>, scalar_prefetch = 0 : i64, scratch_operands = 1 : i64, tpu.core_type = #tpu.core_type<tc>, window_params = [{transform_indices = @transform_0, window_bounds = array<i64: 16, 128>}, {transform_indices = @transform_1, window_bounds = array<i64: 16, 128>}, {transform_indices = @transform_2, window_bounds = array<i64: 1, 1, 1>}]} {
    %c0_i32 = arith.constant 0 : i32
    %0 = arith.cmpi eq, %arg1, %c0_i32 : i32
    %1 = arith.extui %0 : i1 to i32
    %c0_i32_0 = arith.constant 0 : i32
    %2 = arith.cmpi ne, %1, %c0_i32_0 : i32
    scf.if %2 {
      %cst_18 = arith.constant 0.000000e+00 : f32
      %37 = vector.broadcast %cst_18 : f32 to vector<8x128xf32>
      %c0_19 = arith.constant 0 : index
      %c0_20 = arith.constant 0 : index
      %38 = vector.load %arg5[%c0_19, %c0_20] : memref<8x128xf32, #tpu.memory_space<vmem>>, vector<8x128xf32>
      tpu.vector_store %arg5[%c0_19, %c0_20], %37 {strides = array<i32>} : memref<8x128xf32, #tpu.memory_space<vmem>>, vector<8x128xf32>,
    } else {
    }
    %c0 = arith.constant 0 : index
    %c0_1 = arith.constant 0 : index
    %3 = vector.load %arg2[%c0, %c0_1] : memref<16x128xf32, #tpu.memory_space<vmem>>, vector<16x128xf32>
    %c0_2 = arith.constant 0 : index
    %c0_3 = arith.constant 0 : index
    %4 = vector.load %arg3[%c0_2, %c0_3] : memref<16x128xf32, #tpu.memory_space<vmem>>, vector<16x128xf32>
    %5 = math.absf %3 : vector<16x128xf32>
    %cst = arith.constant 0.000000e+00 : f32
    %6 = vector.broadcast %cst : f32 to vector<16x128xf32>
    %7 = arith.subf %6, %5 : vector<16x128xf32>
    %8 = math.exp %7 : vector<16x128xf32>
    %9 = math.log1p %8 : vector<16x128xf32>
    %cst_4 = arith.constant 2.000000e+00 : f32
    %10 = vector.broadcast %cst_4 : f32 to vector<16x128xf32>
    %11 = arith.mulf %10, %4 : vector<16x128xf32>
    %cst_5 = arith.constant 1.000000e+00 : f32
    %12 = vector.broadcast %cst_5 : f32 to vector<16x128xf32>
    %13 = arith.subf %11, %12 : vector<16x128xf32>
    %14 = arith.mulf %3, %13 : vector<16x128xf32>
    %cst_6 = arith.constant 0.000000e+00 : f32
    %15 = vector.broadcast %cst_6 : f32 to vector<16x128xf32>
    %16 = arith.cmpf oge, %14, %15 : vector<16x128xf32>
    %cst_7 = arith.constant 0.000000e+00 : f32
    %17 = vector.broadcast %cst_7 : f32 to vector<16x128xf32>
    %18 = arith.select %16, %17, %5 : vector<16x128xi1>, vector<16x128xf32>
    %19 = arith.addf %18, %9 : vector<16x128xf32>
    %cst_8 = arith.constant 1.000000e+00 : f32
    %20 = vector.broadcast %cst_8 : f32 to vector<16x128xf32>
    %21 = arith.addf %20, %8 : vector<16x128xf32>
    %cst_9 = arith.constant 1.000000e+00 : f32
    %22 = vector.broadcast %cst_9 : f32 to vector<16x128xf32>
    %23 = arith.divf %22, %21 : vector<16x128xf32>
    %cst_10 = arith.constant 1.000000e+00 : f32
    %24 = vector.broadcast %cst_10 : f32 to vector<16x128xf32>
    %25 = arith.select %16, %8, %24 : vector<16x128xi1>, vector<16x128xf32>
    %26 = arith.mulf %25, %23 : vector<16x128xf32>
    %27 = arith.mulf %26, %26 : vector<16x128xf32>
    %28 = arith.mulf %27, %19 : vector<16x128xf32>
    %c0_11 = arith.constant 0 : index
    %c0_12 = arith.constant 0 : index
    %29 = vector.load %arg5[%c0_11, %c0_12] : memref<8x128xf32, #tpu.memory_space<vmem>>, vector<8x128xf32>
    %30 = vector.shape_cast %28 : vector<16x128xf32> to vector<2x8x128xf32>
    %cst_13 = arith.constant dense<0.000000e+00> : vector<8x128xf32>
    %31 = vector.multi_reduction <add>, %30, %cst_13 [0] : vector<2x8x128xf32> to vector<8x128xf32>
    %32 = arith.addf %29, %31 : vector<8x128xf32>
    %c0_14 = arith.constant 0 : index
    %c0_15 = arith.constant 0 : index
    %33 = vector.load %arg5[%c0_14, %c0_15] : memref<8x128xf32, #tpu.memory_space<vmem>>, vector<8x128xf32>
    tpu.vector_store %arg5[%c0_14, %c0_15], %32 {strides = array<i32>} : memref<8x128xf32, #tpu.memory_space<vmem>>, vector<8x128xf32>,
    %c0_i32_16 = arith.constant 0 : i32
    %34 = arith.cmpi eq, %arg1, %c0_i32_16 : i32
    %35 = arith.extui %34 : i1 to i32
    %c0_i32_17 = arith.constant 0 : i32
    %36 = arith.cmpi ne, %35, %c0_i32_17 : i32
    scf.if %36 {
      %c0_18 = arith.constant 0 : index
      %c0_19 = arith.constant 0 : index
      %37 = vector.load %arg5[%c0_18, %c0_19] : memref<8x128xf32, #tpu.memory_space<vmem>>, vector<8x128xf32>
      %38 = vector.shape_cast %37 : vector<8x128xf32> to vector<1x8x128xf32>
      %cst_20 = arith.constant dense<0.000000e+00> : vector<1xf32>
      %39 = vector.multi_reduction <add>, %38, %cst_20 [1, 2] : vector<1x8x128xf32> to vector<1xf32>
      %40 = vector.shape_cast %39 : vector<1xf32> to vector<1x1x1xf32>
      %41 = vector.extract %40[0, 0, 0] : f32 from vector<1x1x1xf32>
      %42 = vector.broadcast %41 : f32 to vector<1x1x1xf32>
      %c0_21 = arith.constant 0 : index
      %c0_22 = arith.constant 0 : index
      %c0_23 = arith.constant 0 : index
      %43 = vector.load %arg4[%c0_21, %c0_22, %c0_23] : memref<1x1x1xf32, #tpu.memory_space<vmem>>, vector<1x1x1xf32>
      tpu.vector_store %arg4[%c0_21, %c0_22, %c0_23], %42 {strides = array<i32>} : memref<1x1x1xf32, #tpu.memory_space<vmem>>, vector<1x1x1xf32>,
    } else {
    }
    return
  }
  func.func @transform_0(%arg0: i32, %arg1: i32) -> (i32, i32) {
    %c1_i32 = arith.constant 1 : i32
    %0 = arith.muli %arg0, %c1_i32 : i32
    %1 = arith.addi %0, %arg1 : i32
    %c0_i32 = arith.constant 0 : i32
    %c0_i32_0 = arith.constant 0 : i32
    return %1, %c0_i32 : i32, i32
  }
  func.func @transform_1(%arg0: i32, %arg1: i32) -> (i32, i32) {
    %c1_i32 = arith.constant 1 : i32
    %0 = arith.muli %arg0, %c1_i32 : i32
    %1 = arith.addi %0, %arg1 : i32
    %c0_i32 = arith.constant 0 : i32
    %c0_i32_0 = arith.constant 0 : i32
    return %1, %c0_i32 : i32, i32
  }
  func.func @transform_2(%arg0: i32, %arg1: i32) -> (i32, i32, i32) {
    %c0_i32 = arith.constant 0 : i32
    %c0_i32_0 = arith.constant 0 : i32
    %c0_i32_1 = arith.constant 0 : i32
    return %arg0, %c0_i32, %c0_i32_0 : i32, i32, i32
  }
}

</mosaic_0001>

<llo_original>
// kernel: tpu_custom_call.1
$region0: #{tpu_custom_call.1}
  #allocation0 [shape = 'u32[]', space=smem, size = 0x4, offset = 0x4, fixed_abs, tag = 'smem constant byte address 0x4 - core index']
  #allocation1 [shape = 'u32[144,128]{1,0:T(1,128)}', space=vmem, size = 0x12000, scoped, tag = 'internal scratch']
  #allocation2 [shape = 'f32[8,128]{1,0:T(8,128)}', space=vmem, size = 0x1000, scoped, tag = 'scratch operand']
  %s0 = inlined_call_operand.hbm [shape: f32[16,128], index: 0, kind: input, shape index: {}]
  %s1 = inlined_call_operand.hbm [shape: f32[16,128], index: 1, kind: input, shape index: {}]
  %s2 = inlined_call_operand.hbm [shape: f32[1,1,1], index: 2, kind: output, shape index: {}]
  %s3 = sld [smem:[#allocation0]]
  $region34: #{tpu_custom_call.1} parent=0
    _
  %s5 = ssub.s32 1, %s3
  %s6 = scalar_select 0, %s5, %s3
  $region1: #{tpu_custom_call.1} parent=0
    #allocation3 [shape = 'u8[8192]{0}', space=vmem, size = 0x2000, scoped, tag = 'input window, operand 0, single buffered']
    #allocation4 [shape = 's32[1]{0}', space=sflag, size = 0x4, scoped, tag = 'scoped memory for tpu_custom_call.1']
    #allocation5 [shape = 's32[1]{0}', space=sflag, size = 0x4, scoped, tag = 'scoped memory for tpu_custom_call.1']
    #allocation6 [shape = 'u8[8192]{0}', space=vmem, size = 0x2000, scoped, tag = 'input window, operand 1, single buffered']
    #allocation7 [shape = 's32[1]{0}', space=sflag, size = 0x4, scoped, tag = 'scoped memory for tpu_custom_call.1']
    #allocation8 [shape = 'u8[512]{0}', space=vmem, size = 0x400, scoped, tag = 'output window, operand 0, single buffered']
    %7 = vsyncpa [#allocation4], 0
    %8 = vsyncpa [#allocation7], 0
    %9 = vsyncpa [#allocation5], 0
    // Predicated region
    $region2: #{tpu_custom_call.1} parent=1 // pred_check
      _
    $region3: #{tpu_custom_call.1} parent=1 // pred_check_branch
      %11 = sbr.rel (0) target = $region5
    $region4: #{tpu_custom_call.1} parent=1 // pred_region
      %s12 = sadd.s32 0, 0
      %s13 = smul.u32 2, %s12
      %s15 = ssub.s32 256, 256
      %16 = vsyncadd [#allocation4], %s15
      %s17 = smul.addr %s13, 128
      %s18 = scalar_lea.hbm %s0, %s17
      %s19 = sshll.u32 [#allocation3], 4
      %s20 = int_to_ptr.vmem [resolvable:$true] %s19
      %25 = dma.hbm_to_vmem [thread:$0]  %s18, 256, %s20, [#allocation4], 128, 128, 8
    $region5: #{tpu_custom_call.1} parent=1 // pred_fallthru
      _
    // Predicated region
    $region6: #{tpu_custom_call.1} parent=1 // pred_check
      _
    $region7: #{tpu_custom_call.1} parent=1 // pred_check_branch
      %27 = sbr.rel (0) target = $region9
    $region8: #{tpu_custom_call.1} parent=1 // pred_region
      %s28 = sadd.s32 0, 0
      %s29 = smul.u32 2, %s28
      %s31 = ssub.s32 256, 256
      %32 = vsyncadd [#allocation7], %s31
      %s33 = smul.addr %s29, 128
      %s34 = scalar_lea.hbm %s1, %s33
      %s35 = sshll.u32 [#allocation6], 4
      %s36 = int_to_ptr.vmem [resolvable:$true] %s35
      %41 = dma.hbm_to_vmem [thread:$0]  %s34, 256, %s36, [#allocation7], 128, 128, 8
    $region9: #{tpu_custom_call.1} parent=1 // pred_fallthru
      _
    // Predicated region
    $region10: #{tpu_custom_call.1} parent=1 // pred_check
      _
    $region11: #{tpu_custom_call.1} parent=1 // pred_check_branch
      %43 = sbr.rel (0) target = $region13
    $region12: #{tpu_custom_call.1} parent=1 // pred_region
      %44 = dma.done [#allocation4], 256
    $region13: #{tpu_custom_call.1} parent=1 // pred_fallthru
      _
    // Predicated region
    $region14: #{tpu_custom_call.1} parent=1 // pred_check
      _
    $region15: #{tpu_custom_call.1} parent=1 // pred_check_branch
      %46 = sbr.rel (0) target = $region17
    $region16: #{tpu_custom_call.1} parent=1 // pred_region
      %47 = dma.done [#allocation7], 256
    $region17: #{tpu_custom_call.1} parent=1 // pred_fallthru
      _
    %s48 = sadd.s32 0, 0
    %s49 = smul.u32 2, %s48
    %s50 = sadd.s32 0, 0
    %s51 = smul.u32 2, %s50
    %p52 = scmp.eq.s32.totalorder 0, 0
    // Predicated region
    $region18: #{tpu_custom_call.1} parent=1 // pred_check
      %p53 = pneg %p52
    $region19: #{tpu_custom_call.1} parent=1 // pred_check_branch
      %55 = sbr.rel (%p53) target = $region21
    $region20: #{tpu_custom_call.1} parent=1 // pred_region
      %56 = vst [vmem:[#allocation2] sm:$0xff] 0.0
    $region21: #{tpu_custom_call.1} parent=1 // pred_fallthru
      _
    %v57 = vld [vmem:[#allocation3] sm:$0xff]
    %v58 = vld [vmem:[#allocation3 + $0x8] sm:$0xff]
    %v59 = vld [vmem:[#allocation6] sm:$0xff]
    %v60 = vld [vmem:[#allocation6 + $0x8] sm:$0xff]
    %v61 = vand.u32 2147483647, %v57
    %v62 = vand.u32 2147483647, %v58
    %v63 = vsub.f32 0.0, %v61
    %v64 = vsub.f32 0.0, %v62
    %v65 = vmul.f32 %v63, 1.442695
    %v66 = vpow.pop %v65
    %v67 = vmul.f32 %v64, 1.442695
    %v68 = vpow.pop %v67
    %v69 = vadd.f32 %v66, 1.0
    %v70 = vlog2.pop %v69
    %v71 = vmul.f32 %v70, 0.6931472
    %v72 = vmul.f32 -0.5, %v66
    %v73 = vadd.f32 %v72, 1.0
    %v74 = vmul.f32 %v73, %v66
    %v75 = vand.u32 2147483647, %v66
    %vm76 = vcmp.lt.f32.partialorder %v75, 0.0004427343
    %v77 = vsel %vm76, %v74, %v71
    %v78 = vadd.f32 %v68, 1.0
    %v79 = vlog2.pop %v78
    %v80 = vmul.f32 %v79, 0.6931472
    %v81 = vmul.f32 -0.5, %v68
    %v82 = vadd.f32 %v81, 1.0
    %v83 = vmul.f32 %v82, %v68
    %v84 = vand.u32 2147483647, %v68
    %vm85 = vcmp.lt.f32.partialorder %v84, 0.0004427343
    %v86 = vsel %vm85, %v83, %v80
    %v87 = vmul.f32 %v59, 2.0
    %v88 = vmul.f32 %v60, 2.0
    %v89 = vsub.f32 %v87, 1.0
    %v90 = vsub.f32 %v88, 1.0
    %v91 = vmul.f32 %v57, %v89
    %v92 = vmul.f32 %v58, %v90
    %vm93 = vcmp.ge.f32.partialorder %v91, 0.0
    %vm94 = vcmp.ge.f32.partialorder %v92, 0.0
    %v95 = vsel %vm93, 0.0, %v61
    %v96 = vsel %vm94, 0.0, %v62
    %v97 = vadd.f32 %v95, %v77
    %v98 = vadd.f32 %v96, %v86
    %v99 = vadd.f32 %v66, 1.0
    %v100 = vadd.f32 %v68, 1.0
    %v101 = vrcp.pop %v99
    %v102 = vmul.f32 1.0, %v101
    %v103 = vrcp.pop %v100
    %v104 = vmul.f32 1.0, %v103
    %v105 = vsel %vm93, %v66, 1.0
    %v106 = vsel %vm94, %v68, 1.0
    %v107 = vmul.f32 %v105, %v102
    %v108 = vmul.f32 %v106, %v104
    %v109 = vmul.f32 %v107, %v107
    %v110 = vmul.f32 %v108, %v108
    %v111 = vmul.f32 %v109, %v97
    %v112 = vmul.f32 %v110, %v98
    %v113 = vld [vmem:[#allocation2] sm:$0xff]
    %v114 = vadd.f32 %v111, %v112
    %v115 = vadd.f32 %v113, %v114
    %116 = vst [vmem:[#allocation2] sm:$0xff] %v115
    // Predicated region
    $region22: #{tpu_custom_call.1} parent=1 // pred_check
      %p117 = pneg %p52
    $region23: #{tpu_custom_call.1} parent=1 // pred_check_branch
      %119 = sbr.rel (%p117) target = $region25
    $region24: #{tpu_custom_call.1} parent=1 // pred_region
      %v120 = vld [vmem:[#allocation2] sm:$0xff]
      %121 = vadd.xlane.f32.xlu0 %v120
      %v122 = vpop.xlane.xlu0 %121
      %v123 = vrot.slane %v122, 4
      %v124 = vadd.f32 %v122, %v123
      %v125 = vrot.slane %v124, 2
      %v126 = vadd.f32 %v124, %v125
      %v127 = vrot.slane %v126, 1
      %v128 = vadd.f32 %v126, %v127
      %s129 = vtos %v128
      %v130 = vstv %s129
      %vm131 = vcmask 0
      %132 = vst.msk [vmem:[#allocation8] sm:$0x1] %vm131, %v130
    $region25: #{tpu_custom_call.1} parent=1 // pred_fallthru
      _
    // Predicated region
    $region26: #{tpu_custom_call.1} parent=1 // pred_check
      _
    $region27: #{tpu_custom_call.1} parent=1 // pred_check_branch
      %134 = sbr.rel (0) target = $region29
    $region28: #{tpu_custom_call.1} parent=1 // pred_region
      %s136 = ssub.s32 16, 16
      %137 = vsyncadd [#allocation5], %s136
      %s139 = sshll.u32 [#allocation8], 4
      %s140 = int_to_ptr.vmem [resolvable:$true] %s139
      %142 = dma.vmem_to_hbm [thread:$0]  %s140, 16, %s2, [#allocation5]
    $region29: #{tpu_custom_call.1} parent=1 // pred_fallthru
      _
    // Predicated region
    $region30: #{tpu_custom_call.1} parent=1 // pred_check
      _
    $region31: #{tpu_custom_call.1} parent=1 // pred_check_branch
      %144 = sbr.rel (0) target = $region33
    $region32: #{tpu_custom_call.1} parent=1 // pred_region
      %145 = dma.done [#allocation5], 16
    $region33: #{tpu_custom_call.1} parent=1 // pred_fallthru
      _
    %146 = vsyncpa [#allocation4], 1
    %147 = vsyncpa [#allocation7], 1
    %148 = vsyncpa [#allocation5], 1

</llo_original>
